<compile_context>
chip_gen: v5e
topology: v5e:2x2
jax: 0.10.0
libtpu: 0.0.40
codegen_flags: <defaults>
</compile_context>

<pallas_src>
import functools

import jax
import jax.numpy as jnp
from jax.experimental import pallas as pl
from jax.experimental.pallas import tpu as pltpu


def _downsampling_kernel(x_ref, w_ref, b_ref, o_ref, *, pool_type, num_window):
    """One (image, lane-tile) block of pooled-output pixels.

    x_ref : (1, P, Cin, tm) bf16  window-position-major activations
    w_ref : (Cout, Cin)     bf16  BN-folded 1x1-conv weight (resident across grid)
    b_ref : (Cout, 1)       f32   BN-folded bias            (resident across grid)
    o_ref : (1, Cout, tm)   bf16  pooled output, lane-dense on tm
    """
    w = w_ref[...]
    b = b_ref[...]

    if pool_type == "max":
        # max_p relu(W @ x_p + b) == relu(max_p (W @ x_p) + b)
        # -> only the running maximum lives inside the window loop.
        acc = jnp.dot(w, x_ref[0, 0], preferred_element_type=jnp.float32)
        for p in range(1, num_window):           # static, small (ph*pw) -> unrolled
            acc = jnp.maximum(
                acc, jnp.dot(w, x_ref[0, p], preferred_element_type=jnp.float32))
        acc = jnp.maximum(acc + b, 0.0)           # single bias-add + ReLU epilogue
    else:  # avg: ReLU is nonlinear -> bias+ReLU stay per window position,
        #        but the bias broadcast is hoisted out of the unrolled loop.
        b_b = jnp.broadcast_to(b, (o_ref.shape[1], o_ref.shape[2]))
        acc = jnp.maximum(
            jnp.dot(w, x_ref[0, 0], preferred_element_type=jnp.float32) + b_b, 0.0)
        for p in range(1, num_window):
            acc = acc + jnp.maximum(
                jnp.dot(w, x_ref[0, p], preferred_element_type=jnp.float32) + b_b, 0.0)
        acc = acc * (1.0 / num_window)

    o_ref[0] = acc.astype(o_ref.dtype)


def _pick_lane_tile(hw_out, per_lane_bytes, budget_bytes):
    """Lane-tile size whose pipelined working set fits `budget_bytes`.

    Returns (tm, hw_pad): tm is either the full extent (always a legal block
    shape) or a multiple of 128; hw_pad is the padded lane extent (multiple of
    tm) the caller must pad the arrays to.
    """
    cap = max(128, (budget_bytes // per_lane_bytes) // 128 * 128)
    if hw_out <= cap:
        return hw_out, hw_out                    # full-extent block, no padding
    if hw_out % 128 == 0:
        # Prefer a divisor of hw_out (no padding) as long as it stays big enough
        # to amortize the ~0.35 us per-grid-step overhead.
        tm = cap
        while tm >= max(128, cap // 2):
            if hw_out % tm == 0:
                return tm, hw_out
            tm -= 128
    tm = cap
    hw_pad = pl.cdiv(hw_out, tm) * tm
    return tm, hw_pad


def downsampling_forward(x_nchw, conv_w, conv_b, bn_gamma, bn_beta,
                         bn_mean, bn_var, *, pool_window=(2, 2),
                         pool_type="max", bn_eps=1e-5,
                         out_dtype=jnp.bfloat16):
    """Forward pass of Downsampling (eval-mode BatchNorm).

    x_nchw : (N, Cin, H, W) float32   (PyTorch NCHW convention)
    conv_w : (Cout, Cin, 1, 1)        1x1 conv weight
    conv_b : (Cout,)
    bn_*   : BatchNorm2d parameters / running stats (eval mode)
    returns: (N, Cout, H//ph, W//pw) in `out_dtype` (bf16 by default; precision
             choice -- activations/weights are bf16 in the kernel, f32 accumulate)
    """
    assert pool_type in ("max", "avg")
    if isinstance(pool_window, int):
        pool_window = (pool_window, pool_window)
    N, Cin, H, W = x_nchw.shape
    Cout = conv_w.shape[0]
    ph, pw = pool_window
    assert H % ph == 0 and W % pw == 0
    Hout, Wout = H // ph, W // pw
    P = ph * pw
    HW = Hout * Wout

    # ---- glue: fold BatchNorm into the conv (eval mode) ----------------------
    inv_std = bn_gamma / jnp.sqrt(bn_var + bn_eps)                         # (Cout,)
    w2d = (conv_w.reshape(Cout, Cin) * inv_std[:, None]).astype(jnp.bfloat16)
    bias = ((conv_b - bn_mean) * inv_std + bn_beta).reshape(Cout, 1)
    bias = bias.astype(jnp.float32)

    # ---- glue: window-major, lane-dense activation layout --------------------
    # (N, Cin, H, W) -> (N, Cin, Hout, ph, Wout, pw) -> (N, ph, pw, Cin, Hout, Wout)
    # -> (N, P, Cin, HW).  Batch stays the leading (grid) axis so the output
    # reshape back to NCHW is free (no transpose).
    # TODO(synk): the cast+transpose is wrapper-side HBM traffic; an in-kernel
    #             NCHW window gather (strided deinterleave in VMEM) would remove it.
    x6 = x_nchw.astype(jnp.bfloat16).reshape(N, Cin, Hout, ph, Wout, pw)
    x_pre = jnp.transpose(x6, (0, 3, 5, 1, 2, 4)).reshape(N, P, Cin, HW)

    out_bytes = jnp.dtype(out_dtype).itemsize
    # Bytes per output lane of pipelined working set:
    #   double-buffered input + output blocks + rough f32 in-kernel working set.
    per_lane = 2 * (P * Cin * 2 + Cout * out_bytes) + 3 * Cout * 4
    tm, hw_pad = _pick_lane_tile(HW, per_lane, budget_bytes=4 << 20)
    if hw_pad != HW:
        x_pre = jnp.pad(x_pre, ((0, 0), (0, 0), (0, 0), (0, hw_pad - HW)))

    grid = (N, hw_pad // tm)

    # VMEM budget: double-buffered IO blocks + resident weight/bias + f32
    # intermediates, x2 headroom, clamped to [32 MiB, 48 MiB] (safe on v7x's
    # 64 MiB physical per-TC VMEM, plenty on v5e/v6e's 128 MiB).
    needed = (2 * (P * Cin * tm * 2 + Cout * tm * out_bytes)
              + 2 * (Cout * Cin * 2 + Cout * 4)
              + 4 * Cout * tm * 4)
    vmem_limit = int(min(max(2 * needed, 32 << 20), 48 << 20))

    kernel = functools.partial(_downsampling_kernel,
                               pool_type=pool_type, num_window=P)

    cost = pl.CostEstimate(
        flops=2 * N * H * W * Cin * Cout,
        transcendentals=0,
        bytes_accessed=(N * P * Cin * hw_pad) * 2 + Cout * Cin * 2 + Cout * 4
                       + N * Cout * hw_pad * out_bytes,
    )

    out3 = pl.pallas_call(
        kernel,
        out_shape=jax.ShapeDtypeStruct((N, Cout, hw_pad), out_dtype),
        grid_spec=pltpu.PrefetchScalarGridSpec(
            num_scalar_prefetch=0,
            grid=grid,
            in_specs=[
                pl.BlockSpec((1, P, Cin, tm), lambda n, i: (n, 0, 0, i)),  # activations
                pl.BlockSpec((Cout, Cin), lambda n, i: (0, 0)),            # weight (resident)
                pl.BlockSpec((Cout, 1), lambda n, i: (0, 0)),              # bias   (resident)
            ],
            out_specs=pl.BlockSpec((1, Cout, tm), lambda n, i: (n, 0, i)),  # lane-dense
        ),
        compiler_params=pltpu.CompilerParams(
            dimension_semantics=("parallel", "parallel"),
            vmem_limit_bytes=vmem_limit,
        ),
        cost_estimate=cost,
    )(x_pre, w2d, bias)

    if hw_pad != HW:
        out3 = out3[:, :, :HW]
    # Output is already (N, Cout, Hout*Wout): the NCHW reshape below is free.
    return out3.reshape(N, Cout, Hout, Wout)


def _reference_forward(x_nchw, conv_w, conv_b, bn_gamma, bn_beta,
                       bn_mean, bn_var, *, pool_window=(2, 2),
                       pool_type="max", bn_eps=1e-5):
    """Pure-JAX (f32) reference mirroring the PyTorch module in eval mode."""
    N, Cin, H, W = x_nchw.shape
    Cout = conv_w.shape[0]
    ph, pw = pool_window
    y = jnp.einsum("nchw,oc->nohw", x_nchw, conv_w.reshape(Cout, Cin)) \
        + conv_b[None, :, None, None]
    y = (y - bn_mean[None, :, None, None]) / jnp.sqrt(bn_var + bn_eps)[None, :, None, None]
    y = y * bn_gamma[None, :, None, None] + bn_beta[None, :, None, None]
    y = jnp.maximum(y, 0.0)
    y = y.reshape(N, Cout, H // ph, ph, W // pw, pw)
    if pool_type == "max":
        return jnp.max(y, axis=(3, 5))
    return jnp.mean(y, axis=(3, 5))


if __name__ == "__main__":
    # small shapes consistent with the module: batch=2, in_channels=4,
    # spatial 16x16, one dense layer with channels=8, pooling window (2,2)
    N, Cin, H, W, Cout = 2, 4, 16, 16, 8
    pool_window = (2, 2)

    key = jax.random.PRNGKey(0)
    k_x, k_w, k_b, k_g, k_bt = jax.random.split(key, 5)
    x = jax.random.normal(k_x, (N, Cin, H, W), dtype=jnp.float32)
    conv_w = jax.random.normal(k_w, (Cout, Cin, 1, 1), dtype=jnp.float32) * 0.1
    conv_b = jax.random.normal(k_b, (Cout,), dtype=jnp.float32) * 0.1
    bn_gamma = 1.0 + 0.1 * jax.random.normal(k_g, (Cout,), dtype=jnp.float32)
    bn_beta = 0.1 * jax.random.normal(k_bt, (Cout,), dtype=jnp.float32)
    bn_mean = jnp.zeros((Cout,), jnp.float32)   # fresh running stats (eval mode)
    bn_var = jnp.ones((Cout,), jnp.float32)

    for pool_type in ("max", "avg"):
        out = downsampling_forward(x, conv_w, conv_b, bn_gamma, bn_beta,
                                   bn_mean, bn_var,
                                   pool_window=pool_window, pool_type=pool_type)
        out = jax.block_until_ready(out)

        ref = _reference_forward(x, conv_w, conv_b, bn_gamma, bn_beta,
                                 bn_mean, bn_var,
                                 pool_window=pool_window, pool_type=pool_type)
        assert out.shape == (N, Cout, H // 2, W // 2)
        # bf16 activations/weights/output in the kernel (f32 accumulate)
        assert jnp.allclose(out.astype(jnp.float32), ref, atol=2e-2, rtol=2e-2), \
            f"mismatch for pool_type={pool_type}"

    print("KERNEL_OK")
</pallas_src>

<mosaic_0001>
module attributes {stable_mosaic.version = 11 : i64} {
  func.func @_downsampling_kernel(%arg0: i32, %arg1: i32, %arg2: memref<1x4x4x64xbf16, #tpu.memory_space<vmem>>, %arg3: memref<8x4xbf16, #tpu.memory_space<vmem>>, %arg4: memref<8x1xf32, #tpu.memory_space<vmem>>, %arg5: memref<1x8x64xbf16, #tpu.memory_space<vmem>>) attributes {dimension_semantics = [#tpu.dimension_semantics<parallel>, #tpu.dimension_semantics<parallel>], iteration_bounds = array<i64: 2, 1>, scalar_prefetch = 0 : i64, scratch_operands = 0 : i64, tpu.core_type = #tpu.core_type<tc>, window_params = [{transform_indices = @transform_0, window_bounds = array<i64: 1, 4, 4, 64>}, {pipeline_mode = #tpu.pipeline_mode<synchronous>, transform_indices = @transform_1, window_bounds = array<i64: 8, 4>}, {pipeline_mode = #tpu.pipeline_mode<synchronous>, transform_indices = @transform_2, window_bounds = array<i64: 8, 1>}, {transform_indices = @transform_3, window_bounds = array<i64: 1, 8, 64>}]} {
    %c0 = arith.constant 0 : index
    %c0_0 = arith.constant 0 : index
    %0 = vector.load %arg3[%c0, %c0_0] : memref<8x4xbf16, #tpu.memory_space<vmem>>, vector<8x4xbf16>
    %c0_1 = arith.constant 0 : index
    %c0_2 = arith.constant 0 : index
    %1 = vector.load %arg4[%c0_1, %c0_2] : memref<8x1xf32, #tpu.memory_space<vmem>>, vector<8x1xf32>
    %c0_3 = arith.constant 0 : index
    %c0_4 = arith.constant 0 : index
    %c0_5 = arith.constant 0 : index
    %c0_6 = arith.constant 0 : index
    %2 = vector.load %arg2[%c0_3, %c0_4, %c0_5, %c0_6] : memref<1x4x4x64xbf16, #tpu.memory_space<vmem>>, vector<1x1x4x64xbf16>
    %3 = vector.shape_cast %2 : vector<1x1x4x64xbf16> to vector<4x64xbf16>
    %cst = arith.constant dense<0.000000e+00> : vector<8x64xf32>
    %4 = tpu.matmul %0, %3, %cst {dimension_numbers = #tpu.dot_dimension_numbers<[1], [0], [0], [1], [0, 0, 1, 1], [], []>} : vector<8x4xbf16>, vector<4x64xbf16>, vector<8x64xf32> -> vector<8x64xf32>
    %c0_7 = arith.constant 0 : index
    %c1 = arith.constant 1 : index
    %c0_8 = arith.constant 0 : index
    %c0_9 = arith.constant 0 : index
    %5 = vector.load %arg2[%c0_7, %c1, %c0_8, %c0_9] : memref<1x4x4x64xbf16, #tpu.memory_space<vmem>>, vector<1x1x4x64xbf16>
    %6 = vector.shape_cast %5 : vector<1x1x4x64xbf16> to vector<4x64xbf16>
    %cst_10 = arith.constant dense<0.000000e+00> : vector<8x64xf32>
    %7 = tpu.matmul %0, %6, %cst_10 {dimension_numbers = #tpu.dot_dimension_numbers<[1], [0], [0], [1], [0, 0, 1, 1], [], []>} : vector<8x4xbf16>, vector<4x64xbf16>, vector<8x64xf32> -> vector<8x64xf32>
    %8 = arith.maximumf %4, %7 : vector<8x64xf32>
    %c0_11 = arith.constant 0 : index
    %c2 = arith.constant 2 : index
    %c0_12 = arith.constant 0 : index
    %c0_13 = arith.constant 0 : index
    %9 = vector.load %arg2[%c0_11, %c2, %c0_12, %c0_13] : memref<1x4x4x64xbf16, #tpu.memory_space<vmem>>, vector<1x1x4x64xbf16>
    %10 = vector.shape_cast %9 : vector<1x1x4x64xbf16> to vector<4x64xbf16>
    %cst_14 = arith.constant dense<0.000000e+00> : vector<8x64xf32>
    %11 = tpu.matmul %0, %10, %cst_14 {dimension_numbers = #tpu.dot_dimension_numbers<[1], [0], [0], [1], [0, 0, 1, 1], [], []>} : vector<8x4xbf16>, vector<4x64xbf16>, vector<8x64xf32> -> vector<8x64xf32>
    %12 = arith.maximumf %8, %11 : vector<8x64xf32>
    %c0_15 = arith.constant 0 : index
    %c3 = arith.constant 3 : index
    %c0_16 = arith.constant 0 : index
    %c0_17 = arith.constant 0 : index
    %13 = vector.load %arg2[%c0_15, %c3, %c0_16, %c0_17] : memref<1x4x4x64xbf16, #tpu.memory_space<vmem>>, vector<1x1x4x64xbf16>
    %14 = vector.shape_cast %13 : vector<1x1x4x64xbf16> to vector<4x64xbf16>
    %cst_18 = arith.constant dense<0.000000e+00> : vector<8x64xf32>
    %15 = tpu.matmul %0, %14, %cst_18 {dimension_numbers = #tpu.dot_dimension_numbers<[1], [0], [0], [1], [0, 0, 1, 1], [], []>} : vector<8x4xbf16>, vector<4x64xbf16>, vector<8x64xf32> -> vector<8x64xf32>
    %16 = arith.maximumf %12, %15 : vector<8x64xf32>
    %17 = vector.broadcast %1 : vector<8x1xf32> to vector<8x64xf32>
    %18 = arith.addf %16, %17 : vector<8x64xf32>
    %cst_19 = arith.constant 0.000000e+00 : f32
    %19 = vector.broadcast %cst_19 : f32 to vector<8x64xf32>
    %20 = arith.maximumf %18, %19 : vector<8x64xf32>
    %21 = arith.truncf %20 : vector<8x64xf32> to vector<8x64xbf16>
    %c0_20 = arith.constant 0 : index
    %c0_21 = arith.constant 0 : index
    %c0_22 = arith.constant 0 : index
    %22 = vector.load %arg5[%c0_20, %c0_21, %c0_22] : memref<1x8x64xbf16, #tpu.memory_space<vmem>>, vector<1x8x64xbf16>
    %23 = vector.shape_cast %22 : vector<1x8x64xbf16> to vector<8x64xbf16>
    %24 = vector.shape_cast %21 : vector<8x64xbf16> to vector<1x8x64xbf16>
    tpu.vector_store %arg5[%c0_20, %c0_21, %c0_22], %24 {strides = array<i32>} : memref<1x8x64xbf16, #tpu.memory_space<vmem>>, vector<1x8x64xbf16>,
    return
  }
  func.func @transform_0(%arg0: i32, %arg1: i32) -> (i32, i32, i32, i32) {
    %c0_i32 = arith.constant 0 : i32
    %c0_i32_0 = arith.constant 0 : i32
    %c0_i32_1 = arith.constant 0 : i32
    return %arg0, %c0_i32, %c0_i32_0, %arg1 : i32, i32, i32, i32
  }
  func.func @transform_1(%arg0: i32, %arg1: i32) -> (i32, i32) {
    %c0_i32 = arith.constant 0 : i32
    %c0_i32_0 = arith.constant 0 : i32
    %c0_i32_1 = arith.constant 0 : i32
    return %c0_i32, %c0_i32_0 : i32, i32
  }
  func.func @transform_2(%arg0: i32, %arg1: i32) -> (i32, i32) {
    %c0_i32 = arith.constant 0 : i32
    %c0_i32_0 = arith.constant 0 : i32
    %c0_i32_1 = arith.constant 0 : i32
    return %c0_i32, %c0_i32_0 : i32, i32
  }
  func.func @transform_3(%arg0: i32, %arg1: i32) -> (i32, i32, i32) {
    %c0_i32 = arith.constant 0 : i32
    %c0_i32_0 = arith.constant 0 : i32
    return %arg0, %c0_i32, %arg1 : i32, i32, i32
  }
}

</mosaic_0001>

<llo_original>
// kernel: tpu_custom_call.1
$region0: #{tpu_custom_call.1}
  #allocation0 [shape = 'u32[]', space=smem, size = 0x4, offset = 0x4, fixed_abs, tag = 'smem constant byte address 0x4 - core index']
  #allocation1 [shape = 'u32[72,128]{1,0:T(1,128)}', space=vmem, size = 0x9000, scoped, tag = 'internal scratch']
  %s0 = inlined_call_operand.hbm [shape: bf16[2,4,4,64], index: 0, kind: input, shape index: {}]
  %s1 = inlined_call_operand.vmem [shape: bf16[8,4], index: 1, kind: input, shape index: {}]
  %s2 = inlined_call_operand.vmem [shape: f32[8,1], index: 2, kind: input, shape index: {}]
  %s3 = inlined_call_operand.hbm [shape: bf16[2,8,64], index: 3, kind: output, shape index: {}]
  %s4 = sld [smem:[#allocation0]]
  $region49: #{tpu_custom_call.1} parent=0
    _
  %s6 = ssub.s32 1, %s4
  %s7 = scalar_select 0, %s6, %s4
  $region1: #{tpu_custom_call.1} parent=0
    #allocation2 [shape = 'u8[8192]{0}', space=vmem, size = 0x2000, scoped, tag = 'input window, operand 0']
    #allocation3 [shape = 's32[2]{0}', space=sflag, size = 0x8, scoped, tag = 'scoped memory for tpu_custom_call.1']
    #allocation4 [shape = 's32[2]{0}', space=sflag, size = 0x8, scoped, tag = 'scoped memory for tpu_custom_call.1']
    #allocation5 [shape = 'u8[4096]{0}', space=vmem, size = 0x1000, scoped, tag = 'output window, operand 0']
    %8 = vsyncpa [#allocation3], 0
    %s9 = scalar_lea.sflag [#allocation3], 1
    %10 = vsyncpa %s9, 0
    %11 = vsyncpa [#allocation4], 0
    %s12 = scalar_lea.sflag [#allocation4], 1
    %13 = vsyncpa %s12, 0
    loop: start=0, step=1, limit=4
    $region2: #{tpu_custom_call.1} parent=1 // loop_pre_header
      _
    $region3: #{tpu_custom_call.1} parent=1 // loop_header
      %s15 = sphi 0, %s19
      %p16 = scmp.ge.s32.totalorder %s15, 4
      %s22 = sphi 0, %s34
      %s23 = sphi 0, %s30
      %s24 = sphi 0, %s22
      %s25 = sphi 0, %s23
      %s26 = sphi 0, %s24
      %s27 = sphi 0, %s25
      %s39 = sphi 0, %s41
      %s42 = sphi 0, %s39
      %s43 = sphi 0, %s42
      %s59 = sphi 0, %s43
      %s63 = sphi 0, %s63
      %s65 = sphi 0, %s63
      %s66 = sphi 0, %s65
      %s80 = sphi 0, %s66
      %s84 = sphi 0, %s84
      %s86 = sphi 0, %s84
      %s87 = sphi 0, %s86
      %s101 = sphi 0, %s87
      %s109 = sphi 0, %s111
      %s112 = sphi 0, %s109
      %s113 = sphi 0, %s112
      %s129 = sphi 0, %s113
    $region4: #{tpu_custom_call.1} parent=1 // loop_header_branch
      %18 = sbr.rel (%p16) target = $region8
    $region5: #{tpu_custom_call.1} parent=1 // loop_body
      %s20 = ssub.s32 %s15, 1
      %s21 = ssub.s32 %s15, 2
      %s28 = sadd.s32 1, %s23
      %p29 = scmp.ge.s32.totalorder %s28, 1
      %s30 = scalar_select %p29, 0, %s28
      %s31 = sadd.s32 1, %s22
      %s32 = scalar_select %p29, %s31, %s22
      %p33 = scmp.ge.s32.totalorder %s32, 2
      %s34 = scalar_select %p33, 0, %s32
      %s35 = ssub.s32 %s22, %s34
      %s36 = ssub.s32 %s23, %s30
      %s37 = sor.u32 %s35, %s36
      %p38 = scmp.eq.s32.totalorder %s37, 0
      %s40 = sadd.s32 %s39, 1
      %s41 = scalar_select %p38, %s39, %s40
      %p44 = pneg %p38
      %p45 = scmp.eq.s32.totalorder %s15, 1
      %p46 = por %p44, %p45
      %p47 = scmp.ne.s32.totalorder %s39, %s42
      %p48 = scmp.eq.s32.totalorder %s15, 0
      %p49 = por %p47, %p48
      %p50 = scmp.ne.s32.totalorder %s39, %s42
      %p51 = scmp.eq.s32.totalorder %s20, 1
      %p52 = por %p50, %p51
      %p53 = scmp.ne.s32.totalorder %s42, %s43
      %p54 = scmp.eq.s32.totalorder %s20, 0
      %p55 = por %p53, %p54
      %p56 = scmp.ne.s32.totalorder %s42, %s43
      %p57 = scmp.eq.s32.totalorder %s21, 1
      %p58 = por %p56, %p57
      %p60 = scmp.ne.s32.totalorder %s43, %s59
      %p61 = scmp.eq.s32.totalorder %s21, 0
      %p62 = por %p60, %p61
      %s64 = sadd.s32 %s63, 1
      %p67 = scmp.eq.s32.totalorder %s15, 1
      %p68 = scmp.ne.s32.totalorder %s63, %s65
      %p69 = scmp.eq.s32.totalorder %s15, 0
      %p70 = por %p68, %p69
      %p71 = scmp.ne.s32.totalorder %s63, %s65
      %p72 = scmp.eq.s32.totalorder %s20, 1
      %p73 = por %p71, %p72
      %p74 = scmp.ne.s32.totalorder %s65, %s66
      %p75 = scmp.eq.s32.totalorder %s20, 0
      %p76 = por %p74, %p75
      %p77 = scmp.ne.s32.totalorder %s65, %s66
      %p78 = scmp.eq.s32.totalorder %s21, 1
      %p79 = por %p77, %p78
      %p81 = scmp.ne.s32.totalorder %s66, %s80
      %p82 = scmp.eq.s32.totalorder %s21, 0
      %p83 = por %p81, %p82
      %s85 = sadd.s32 %s84, 1
      %p88 = scmp.eq.s32.totalorder %s15, 1
      %p89 = scmp.ne.s32.totalorder %s84, %s86
      %p90 = scmp.eq.s32.totalorder %s15, 0
      %p91 = por %p89, %p90
      %p92 = scmp.ne.s32.totalorder %s84, %s86
      %p93 = scmp.eq.s32.totalorder %s20, 1
      %p94 = por %p92, %p93
      %p95 = scmp.ne.s32.totalorder %s86, %s87
      %p96 = scmp.eq.s32.totalorder %s20, 0
      %p97 = por %p95, %p96
      %p98 = scmp.ne.s32.totalorder %s86, %s87
      %p99 = scmp.eq.s32.totalorder %s21, 1
      %p100 = por %p98, %p99
      %p102 = scmp.ne.s32.totalorder %s87, %s101
      %p103 = scmp.eq.s32.totalorder %s21, 0
      %p104 = por %p102, %p103
      %s105 = ssub.s32 %s22, %s34
      %s106 = ssub.s32 %s23, %s30
      %s107 = sor.u32 %s105, %s106
      %p108 = scmp.eq.s32.totalorder %s107, 0
      %s110 = sadd.s32 %s109, 1
      %s111 = scalar_select %p108, %s109, %s110
      %p114 = pneg %p108
      %p115 = scmp.eq.s32.totalorder %s15, 1
      %p116 = por %p114, %p115
      %p117 = scmp.ne.s32.totalorder %s109, %s112
      %p118 = scmp.eq.s32.totalorder %s15, 0
      %p119 = por %p117, %p118
      %p120 = scmp.ne.s32.totalorder %s109, %s112
      %p121 = scmp.eq.s32.totalorder %s20, 1
      %p122 = por %p120, %p121
      %p123 = scmp.ne.s32.totalorder %s112, %s113
      %p124 = scmp.eq.s32.totalorder %s20, 0
      %p125 = por %p123, %p124
      %p126 = scmp.ne.s32.totalorder %s112, %s113
      %p127 = scmp.eq.s32.totalorder %s21, 1
      %p128 = por %p126, %p127
      %p130 = scmp.ne.s32.totalorder %s113, %s129
      %p131 = scmp.eq.s32.totalorder %s21, 0
      %p132 = por %p130, %p131
      %p133 = scmp.le.s32.totalorder 1, %s15
      %p134 = scmp.lt.s32.totalorder %s15, 3
      %p135 = pnand %p133, %p134
      %p136 = pneg %p135
      // Predicated region
      $region9: #{tpu_custom_call.1} parent=5 // pred_check
        _
      $region10: #{tpu_custom_call.1} parent=5 // pred_check_branch
        %138 = sbr.rel (%p135) target = $region12
      $region11: #{tpu_custom_call.1} parent=5 // pred_region
        %s139 = ssub.s32 %s15, 1
        // Predicated region
        $region13: #{tpu_custom_call.1} parent=11 // pred_check
          %p140 = pneg %p76
        $region14: #{tpu_custom_call.1} parent=11 // pred_check_branch
          %142 = sbr.rel (%p140) target = $region16
        $region15: #{tpu_custom_call.1} parent=11 // pred_region
          _
        $region16: #{tpu_custom_call.1} parent=11 // pred_fallthru
          _
        // Predicated region
        $region17: #{tpu_custom_call.1} parent=11 // pred_check
          %p143 = pneg %p97
        $region18: #{tpu_custom_call.1} parent=11 // pred_check_branch
          %145 = sbr.rel (%p143) target = $region20
        $region19: #{tpu_custom_call.1} parent=11 // pred_region
          _
        $region20: #{tpu_custom_call.1} parent=11 // pred_fallthru
          _
      $region12: #{tpu_custom_call.1} parent=5 // pred_fallthru
        _
      %p146 = scmp.lt.s32.totalorder %s15, 2
      // Predicated region
      $region21: #{tpu_custom_call.1} parent=5 // pred_check
        %p147 = pneg %p146
      $region22: #{tpu_custom_call.1} parent=5 // pred_check_branch
        %149 = sbr.rel (%p147) target = $region24
      $region23: #{tpu_custom_call.1} parent=5 // pred_region
        // Predicated region
        $region25: #{tpu_custom_call.1} parent=23 // pred_check
          %p150 = pneg %p49
        $region26: #{tpu_custom_call.1} parent=23 // pred_check_branch
          %152 = sbr.rel (%p150) target = $region28
        $region27: #{tpu_custom_call.1} parent=23 // pred_region
          %s153 = sand.u32 %s39, 1
          %s154 = scalar_lea.sflag [#allocation3], %s153
          %s155 = sand.u32 %s39, 1
          %s156 = smul.addr %s155, 8
          %s157 = scalar_lea.vmem [#allocation2], %s156
          %159 = vsyncadd %s154, 0
          %s160 = smul.addr %s22, 4
          %s161 = sadd.s32 %s23, %s160
          %s162 = smul.addr %s161, 2
          %s163 = scalar_lea.hbm %s0, %s162
          %s164 = sshll.u32 %s163, 4
          %s165 = int_to_ptr.hbm [resolvable:$true] %s164
          %s166 = sshll.u32 %s157, 4
          %s167 = int_to_ptr.vmem [resolvable:$true] %s166
          %172 = dma.hbm_to_vmem [thread:$0]  %s165, 128, %s167, %s154, 32, 32, 2
        $region28: #{tpu_custom_call.1} parent=23 // pred_fallthru
          _
      $region24: #{tpu_custom_call.1} parent=5 // pred_fallthru
        _
      %p173 = scmp.le.s32.totalorder 1, %s15
      %p174 = scmp.lt.s32.totalorder %s15, 3
      %p175 = pnand %p173, %p174
      %p176 = pneg %p175
      // Predicated region
      $region29: #{tpu_custom_call.1} parent=5 // pred_check
        _
      $region30: #{tpu_custom_call.1} parent=5 // pred_check_branch
        %178 = sbr.rel (%p175) target = $region32
      $region31: #{tpu_custom_call.1} parent=5 // pred_region
        %s179 = ssub.s32 %s15, 1
        %s180 = sand.u32 %s42, 1
        %s181 = scalar_lea.sflag [#allocation3], %s180
        %s182 = sand.u32 %s42, 1
        %s183 = smul.addr %s182, 8
        %s184 = scalar_lea.vmem [#allocation2], %s183
        // Predicated region
        $region33: #{tpu_custom_call.1} parent=31 // pred_check
          %p185 = pneg %p55
        $region34: #{tpu_custom_call.1} parent=31 // pred_check_branch
          %187 = sbr.rel (%p185) target = $region36
        $region35: #{tpu_custom_call.1} parent=31 // pred_region
          %189 = dma.done %s181, 128
        $region36: #{tpu_custom_call.1} parent=31 // pred_fallthru
          _
        %s190 = sand.u32 %s42, 1
        %s191 = scalar_lea.sflag [#allocation3], %s190
        %s192 = sand.u32 %s42, 1
        %s193 = smul.addr %s192, 8
        %s194 = scalar_lea.vmem [#allocation2], %s193
        %p195 = pneg %p55
        %p196 = pneg %p52
        %p197 = pneg %p76
        %p198 = pneg %p73
        %p199 = pneg %p97
        %p200 = pneg %p94
        %p201 = pneg %p125
        %p202 = pneg %p122
        %s203 = sand.u32 %s112, 1
        %s204 = scalar_lea.sflag [#allocation4], %s203
        %s205 = sand.u32 %s112, 1
        %s206 = smul.addr %s205, 4
        %s207 = scalar_lea.vmem [#allocation5], %s206
        %v209 = vld [vmem:[%s1] sm:$0xf]
        %v210 = vld [vmem:[%s2] sm:$0xff]
        %v211 = vld [vmem:[%s184] sm:$0x3]
        %vm212 = vcmask 31744
        %v214 = vsel %vm212, %v209, 0
        %vm216 = vcmask 1041408
        %v218 = vsel %vm216, %v211, 0
        %220 = vmatpush.bf16.msra.mxu0 0
        %221 = vmatpush.bf16.msra.mxu0 0
        %222 = vmatpush.bf16.msra.mxu0 0
        %223 = vmatpush.bf16.msra.mxu0 0
        %224 = vmatpush.bf16.msra.mxu0 0
        %225 = vmatpush.bf16.msra.mxu0 0
        %226 = vmatpush.bf16.msra.mxu0 0
        %227 = vmatpush.bf16.msra.mxu0 %v218
        %228 = vmatmul.bf16.gmra.mxu0 %v214
        %v229 = vpop.f32.mrf.mxu0
        %v230 = vadd.f32 0.0, %v229
        %v231 = vpop.f32.mrf.mxu0
        %232 = vdwg.mxu0
        %s233 = scalar_lea.vmem %s184, 2 [#allocation2]
        %v234 = vld [vmem:[%s233] sm:$0x3]
        %v236 = vsel %vm216, %v234, 0
        %238 = vmatpush.bf16.msra.mxu0 0
        %239 = vmatpush.bf16.msra.mxu0 0
        %240 = vmatpush.bf16.msra.mxu0 0
        %241 = vmatpush.bf16.msra.mxu0 0
        %242 = vmatpush.bf16.msra.mxu0 0
        %243 = vmatpush.bf16.msra.mxu0 0
        %244 = vmatpush.bf16.msra.mxu0 0
        %245 = vmatpush.bf16.msra.mxu0 %v236
        %246 = vmatmul.bf16.gmra.mxu0 %v214
        %v247 = vpop.f32.mrf.mxu0
        %v248 = vadd.f32 0.0, %v247
        %v249 = vpop.f32.mrf.mxu0
        %250 = vdwg.mxu0
        %v251 = vmax.f32 %v230, %v248
        %s252 = scalar_lea.vmem %s184, 4 [#allocation2]
        %v253 = vld [vmem:[%s252] sm:$0x3]
        %v255 = vsel %vm216, %v253, 0
        %257 = vmatpush.bf16.msra.mxu0 0
        %258 = vmatpush.bf16.msra.mxu0 0
        %259 = vmatpush.bf16.msra.mxu0 0
        %260 = vmatpush.bf16.msra.mxu0 0
        %261 = vmatpush.bf16.msra.mxu0 0
        %262 = vmatpush.bf16.msra.mxu0 0
        %263 = vmatpush.bf16.msra.mxu0 0
        %264 = vmatpush.bf16.msra.mxu0 %v255
        %265 = vmatmul.bf16.gmra.mxu0 %v214
        %v266 = vpop.f32.mrf.mxu0
        %v267 = vadd.f32 0.0, %v266
        %v268 = vpop.f32.mrf.mxu0
        %269 = vdwg.mxu0
        %v270 = vmax.f32 %v251, %v267
        %s271 = scalar_lea.vmem %s184, 6 [#allocation2]
        %v272 = vld [vmem:[%s271] sm:$0x3]
        %v274 = vsel %vm216, %v272, 0
        %276 = vmatpush.bf16.msra.mxu0 0
        %277 = vmatpush.bf16.msra.mxu0 0
        %278 = vmatpush.bf16.msra.mxu0 0
        %279 = vmatpush.bf16.msra.mxu0 0
        %280 = vmatpush.bf16.msra.mxu0 0
        %281 = vmatpush.bf16.msra.mxu0 0
        %282 = vmatpush.bf16.msra.mxu0 0
        %283 = vmatpush.bf16.msra.mxu0 %v274
        %284 = vmatmul.bf16.gmra.mxu0 %v214
        %v285 = vpop.f32.mrf.mxu0
        %v286 = vadd.f32 0.0, %v285
        %v287 = vpop.f32.mrf.mxu0
        %288 = vdwg.mxu0
        %v289 = vmax.f32 %v270, %v286
        %291 = vset.pattern.permute.xlu0 0
        %292 = vperm.xlu0 %291, %v210
        %v293 = vpop.permute.xlu0 %292
        %v295 = vadd.f32 %v289, %v293
        %v296 = vmax.f32 %v295, 0.0
        %v297 = vpack.c.bf16 %v296, %v296
        %vm298 = vcmask 519168
        %299 = vst.msk [vmem:[%s207] sm:$0xf] %vm298, %v297
        %s300 = sand.u32 %s112, 1
        %s301 = scalar_lea.sflag [#allocation4], %s300
        %s302 = sand.u32 %s112, 1
        %s303 = smul.addr %s302, 4
        %s304 = scalar_lea.vmem [#allocation5], %s303
        // Predicated region
        $region37: #{tpu_custom_call.1} parent=31 // pred_check
          %p305 = pneg %p122
        $region38: #{tpu_custom_call.1} parent=31 // pred_check_branch
          %307 = sbr.rel (%p305) target = $region40
        $region39: #{tpu_custom_call.1} parent=31 // pred_region
          %309 = vsyncadd %s301, 0
          %s310 = sadd.s32 %s25, %s24
          %s311 = smul.addr %s310, 4
          %s312 = scalar_lea.hbm %s3, %s311
          %s314 = sshll.u32 %s304, 4
          %s315 = int_to_ptr.vmem [resolvable:$true] %s314
          %s316 = sshll.u32 %s312, 4
          %s317 = int_to_ptr.hbm [resolvable:$true] %s316
          %319 = dma.vmem_to_hbm [thread:$0]  %s315, 64, %s317, %s301
        $region40: #{tpu_custom_call.1} parent=31 // pred_fallthru
          _
      $region32: #{tpu_custom_call.1} parent=5 // pred_fallthru
        _
      %p320 = scmp.le.s32.totalorder 2, %s15
      // Predicated region
      $region41: #{tpu_custom_call.1} parent=5 // pred_check
        %p321 = pneg %p320
      $region42: #{tpu_custom_call.1} parent=5 // pred_check_branch
        %323 = sbr.rel (%p321) target = $region44
      $region43: #{tpu_custom_call.1} parent=5 // pred_region
        %s324 = ssub.s32 %s15, 2
        // Predicated region
        $region45: #{tpu_custom_call.1} parent=43 // pred_check
          %p325 = pneg %p128
        $region46: #{tpu_custom_call.1} parent=43 // pred_check_branch
          %327 = sbr.rel (%p325) target = $region48
        $region47: #{tpu_custom_call.1} parent=43 // pred_region
          %s328 = sand.u32 %s113, 1
          %s329 = scalar_lea.sflag [#allocation4], %s328
          %s330 = sand.u32 %s113, 1
          %s331 = smul.addr %s330, 4
          %s332 = scalar_lea.vmem [#allocation5], %s331
          %334 = dma.done %s329, 64
        $region48: #{tpu_custom_call.1} parent=43 // pred_fallthru
          _
      $region44: #{tpu_custom_call.1} parent=5 // pred_fallthru
        _
    $region6: #{tpu_custom_call.1} parent=1 // loop_footer
      %s19 = sadd.s32 1, %s15
    $region7: #{tpu_custom_call.1} parent=1 // loop_footer_branch
      %14 = sbr.rel target = $region3
    $region8: #{tpu_custom_call.1} parent=1 // loop_exit
      _
    %335 = vsyncpa [#allocation3], 1
    %s336 = scalar_lea.sflag [#allocation3], 1
    %337 = vsyncpa %s336, 1
    %338 = vsyncpa [#allocation4], 1
    %s339 = scalar_lea.sflag [#allocation4], 1
    %340 = vsyncpa %s339, 1

</llo_original>
